<compile_context>
chip_gen: v7x
topology: tpu7x:2x2x1
jax: 0.10.0
libtpu: 0.0.40
codegen_flags: <defaults>
</compile_context>

<pallas_src>
import jax
import jax.numpy as jnp
from jax.experimental import pallas as pl
from jax.experimental.pallas import tpu as pltpu

IN_DIM = 784     # 28*28, full array on the lane-adjacent input dim
H_PAD = 128      # hidden width 100 padded to 128 (lane-dense)
O_PAD = 128      # output width 10 padded to 128 (lane-dense, unmasked stores)
MAX_TILE_B = 2048


def _round_up(n, m):
    return (n + m - 1) // m * m


def _choose_tile_b(B, max_tile=MAX_TILE_B):
    """Largest tile that amortizes per-step overhead; for large batches size
    it so the grid has an even number (>=4) of steps (v7x megacore split with
    >=2 pipelined steps per core). Multiple of 16 for bf16 sublane packing."""
    B = max(int(B), 1)
    tb = min(max_tile, _round_up(B, 16))
    steps = pl.cdiv(B, tb)
    if steps > 1:
        steps = max(4, _round_up(steps, 2))
        tb = min(max_tile, max(16, _round_up(pl.cdiv(B, steps), 16)))
    return tb


def mlp_kernel(x_ref, w1_ref, b1_ref, w2_ref, b2_ref,
               w3_ref, b3_ref, w4_ref, b4_ref, o_ref):
    # One batch tile per grid step. Weights/biases have constant index_maps,
    # so they stay resident in VMEM; only the x / out tiles stream HBM<->VMEM.
    x = x_ref[...].astype(jnp.bfloat16)                 # in-kernel f32->bf16 cast

    h = jnp.dot(x, w1_ref[...], preferred_element_type=jnp.float32)
    h = jnp.maximum(h + b1_ref[...], 0.0)               # f32 epilogue

    h = jnp.dot(h.astype(jnp.bfloat16), w2_ref[...],
                preferred_element_type=jnp.float32)
    h = jnp.maximum(h + b2_ref[...], 0.0)

    h = jnp.dot(h.astype(jnp.bfloat16), w3_ref[...],
                preferred_element_type=jnp.float32)
    h = jnp.maximum(h + b3_ref[...], 0.0)

    out = jnp.dot(h.astype(jnp.bfloat16), w4_ref[...],
                  preferred_element_type=jnp.float32) + b4_ref[...]
    o_ref[...] = out.astype(o_ref.dtype)                # lane-dense bf16 store


def init_params(key):
    """Torch-like nn.Linear init. Weights stored transposed: (in, out)."""
    dims = [(784, 100), (100, 100), (100, 100), (100, 10)]
    params = []
    for fan_in, fan_out in dims:
        kw, kb, key = jax.random.split(key, 3)
        bound = 1.0 / (fan_in ** 0.5)
        w_t = jax.random.uniform(kw, (fan_in, fan_out), jnp.float32, -bound, bound)
        b = jax.random.uniform(kb, (fan_out,), jnp.float32, -bound, bound)
        params.append((w_t, b))
    return params


def pack_params(params):
    """Zero-pad widths to lane multiples (128); weights -> bf16, biases -> f32 rows."""
    in_pads = [IN_DIM, H_PAD, H_PAD, H_PAD]
    out_pads = [H_PAD, H_PAD, H_PAD, O_PAD]
    packed = []
    for (w_t, b), ip, op in zip(params, in_pads, out_pads):
        fi, fo = w_t.shape
        w_pad = jnp.zeros((ip, op), jnp.float32).at[:fi, :fo].set(w_t)
        b_pad = jnp.zeros((1, op), jnp.float32).at[0, :fo].set(b)
        packed.append((w_pad.astype(jnp.bfloat16), b_pad))
    return packed


def mlp_forward(x, packed, *, max_tile_b=MAX_TILE_B):
    """x: (B, 1, 28, 28) or (B, 784), f32. Returns logits (B, 10) in bf16."""
    B = x.shape[0]
    x2d = x.reshape(B, -1)                    # bitcast view; no HBM pass
    assert x2d.shape[1] == IN_DIM

    (w1, b1), (w2, b2), (w3, b3), (w4, b4) = packed

    tb = _choose_tile_b(B, max_tile_b)
    grid = (pl.cdiv(B, tb),)                  # ragged last tile: writes masked by Pallas

    xmap = lambda i: (i, 0)                   # streamed batch tiles
    cmap = lambda i: (0, 0)                   # resident weights / biases

    flops = 2 * B * (IN_DIM * H_PAD + 2 * H_PAD * H_PAD + H_PAD * O_PAD)
    bytes_accessed = (B * IN_DIM * 4 + B * O_PAD * 2
                      + sum(int(w.size) * 2 + int(bb.size) * 4 for w, bb in packed))

    out = pl.pallas_call(
        mlp_kernel,
        out_shape=jax.ShapeDtypeStruct((B, O_PAD), jnp.bfloat16),
        grid=grid,
        in_specs=[
            pl.BlockSpec((tb, IN_DIM), xmap),     # x tile (double-buffered, f32)
            pl.BlockSpec((IN_DIM, H_PAD), cmap),  # w1 (resident)
            pl.BlockSpec((1, H_PAD), cmap),       # b1
            pl.BlockSpec((H_PAD, H_PAD), cmap),   # w2
            pl.BlockSpec((1, H_PAD), cmap),       # b2
            pl.BlockSpec((H_PAD, H_PAD), cmap),   # w3
            pl.BlockSpec((1, H_PAD), cmap),       # b3
            pl.BlockSpec((H_PAD, O_PAD), cmap),   # w4
            pl.BlockSpec((1, O_PAD), cmap),       # b4
        ],
        out_specs=pl.BlockSpec((tb, O_PAD), xmap),
        compiler_params=pltpu.CompilerParams(
            dimension_semantics=("parallel",),        # megacore on v7x; no-op v5e/v6e
            vmem_limit_bytes=32 * 1024 * 1024,        # covers tb=2048 even on v5e
        ),
        cost_estimate=pl.CostEstimate(
            flops=flops, transcendentals=0, bytes_accessed=bytes_accessed),
    )(x2d, w1, b1, w2, b2, w3, b3, w4, b4)

    # TODO(synk): fuse this narrow slice into the downstream consumer
    # (softmax/loss) instead of a standalone read of the padded slab.
    return out[:, :10]


if __name__ == "__main__":
    key = jax.random.PRNGKey(0)
    kx, kp = jax.random.split(key)

    # Small batch of MNIST-shaped inputs, NCHW like the PyTorch module expects.
    x = jax.random.normal(kx, (2, 1, 28, 28), jnp.float32)
    params = init_params(kp)
    packed = pack_params(params)

    out = jax.block_until_ready(mlp_forward(x, packed))
    assert out.shape == (2, 10)

    # Pure-JAX reference applying the same quantization points:
    # x -> bf16, weights bf16, activations -> bf16 before each dot, f32 math
    # otherwise, final logits rounded to bf16 like the kernel's store.
    h = x.reshape(x.shape[0], -1).astype(jnp.bfloat16).astype(jnp.float32)
    for i, (w, b) in enumerate(packed):
        h = h @ w.astype(jnp.float32) + b
        if i < 3:
            h = jnp.maximum(h, 0.0)
            h = h.astype(jnp.bfloat16).astype(jnp.float32)
    ref = h.astype(jnp.bfloat16).astype(jnp.float32)[:, :10]

    out_f32 = out.astype(jnp.float32)
    assert jnp.allclose(out_f32, ref, atol=3e-2, rtol=3e-2), \
        float(jnp.max(jnp.abs(out_f32 - ref)))

    print("KERNEL_OK")
</pallas_src>

<mosaic_0001>
module attributes {stable_mosaic.version = 11 : i64} {
  func.func @mlp_kernel(%arg0: i32, %arg1: memref<16x784xf32, #tpu.memory_space<vmem>>, %arg2: memref<784x128xbf16, #tpu.memory_space<vmem>>, %arg3: memref<1x128xf32, #tpu.memory_space<vmem>>, %arg4: memref<128x128xbf16, #tpu.memory_space<vmem>>, %arg5: memref<1x128xf32, #tpu.memory_space<vmem>>, %arg6: memref<128x128xbf16, #tpu.memory_space<vmem>>, %arg7: memref<1x128xf32, #tpu.memory_space<vmem>>, %arg8: memref<128x128xbf16, #tpu.memory_space<vmem>>, %arg9: memref<1x128xf32, #tpu.memory_space<vmem>>, %arg10: memref<16x128xbf16, #tpu.memory_space<vmem>>) attributes {dimension_semantics = [#tpu.dimension_semantics<parallel>], iteration_bounds = array<i64: 1>, scalar_prefetch = 0 : i64, scratch_operands = 0 : i64, tpu.core_type = #tpu.core_type<tc>, window_params = [{transform_indices = @transform_0, window_bounds = array<i64: 16, 784>}, {pipeline_mode = #tpu.pipeline_mode<synchronous>, transform_indices = @transform_1, window_bounds = array<i64: 784, 128>}, {pipeline_mode = #tpu.pipeline_mode<synchronous>, transform_indices = @transform_2, window_bounds = array<i64: 1, 128>}, {pipeline_mode = #tpu.pipeline_mode<synchronous>, transform_indices = @transform_3, window_bounds = array<i64: 128, 128>}, {pipeline_mode = #tpu.pipeline_mode<synchronous>, transform_indices = @transform_4, window_bounds = array<i64: 1, 128>}, {pipeline_mode = #tpu.pipeline_mode<synchronous>, transform_indices = @transform_5, window_bounds = array<i64: 128, 128>}, {pipeline_mode = #tpu.pipeline_mode<synchronous>, transform_indices = @transform_6, window_bounds = array<i64: 1, 128>}, {pipeline_mode = #tpu.pipeline_mode<synchronous>, transform_indices = @transform_7, window_bounds = array<i64: 128, 128>}, {pipeline_mode = #tpu.pipeline_mode<synchronous>, transform_indices = @transform_8, window_bounds = array<i64: 1, 128>}, {transform_indices = @transform_9, window_bounds = array<i64: 16, 128>}]} {
    %c0 = arith.constant 0 : index
    %c0_0 = arith.constant 0 : index
    %0 = vector.load %arg1[%c0, %c0_0] : memref<16x784xf32, #tpu.memory_space<vmem>>, vector<16x784xf32>
    %1 = arith.truncf %0 : vector<16x784xf32> to vector<16x784xbf16>
    %c0_1 = arith.constant 0 : index
    %c0_2 = arith.constant 0 : index
    %2 = vector.load %arg2[%c0_1, %c0_2] : memref<784x128xbf16, #tpu.memory_space<vmem>>, vector<784x128xbf16>
    %cst = arith.constant dense<0.000000e+00> : vector<16x128xf32>
    %3 = tpu.matmul %1, %2, %cst {dimension_numbers = #tpu.dot_dimension_numbers<[1], [0], [0], [1], [0, 0, 1, 1], [], []>} : vector<16x784xbf16>, vector<784x128xbf16>, vector<16x128xf32> -> vector<16x128xf32>
    %c0_3 = arith.constant 0 : index
    %c0_4 = arith.constant 0 : index
    %4 = vector.load %arg3[%c0_3, %c0_4] : memref<1x128xf32, #tpu.memory_space<vmem>>, vector<1x128xf32>
    %5 = vector.broadcast %4 : vector<1x128xf32> to vector<16x128xf32>
    %6 = arith.addf %3, %5 : vector<16x128xf32>
    %cst_5 = arith.constant 0.000000e+00 : f32
    %7 = vector.broadcast %cst_5 : f32 to vector<16x128xf32>
    %8 = arith.maximumf %6, %7 : vector<16x128xf32>
    %9 = arith.truncf %8 : vector<16x128xf32> to vector<16x128xbf16>
    %c0_6 = arith.constant 0 : index
    %c0_7 = arith.constant 0 : index
    %10 = vector.load %arg4[%c0_6, %c0_7] : memref<128x128xbf16, #tpu.memory_space<vmem>>, vector<128x128xbf16>
    %cst_8 = arith.constant dense<0.000000e+00> : vector<16x128xf32>
    %11 = tpu.matmul %9, %10, %cst_8 {dimension_numbers = #tpu.dot_dimension_numbers<[1], [0], [0], [1], [0, 0, 1, 1], [], []>} : vector<16x128xbf16>, vector<128x128xbf16>, vector<16x128xf32> -> vector<16x128xf32>
    %c0_9 = arith.constant 0 : index
    %c0_10 = arith.constant 0 : index
    %12 = vector.load %arg5[%c0_9, %c0_10] : memref<1x128xf32, #tpu.memory_space<vmem>>, vector<1x128xf32>
    %13 = vector.broadcast %12 : vector<1x128xf32> to vector<16x128xf32>
    %14 = arith.addf %11, %13 : vector<16x128xf32>
    %cst_11 = arith.constant 0.000000e+00 : f32
    %15 = vector.broadcast %cst_11 : f32 to vector<16x128xf32>
    %16 = arith.maximumf %14, %15 : vector<16x128xf32>
    %17 = arith.truncf %16 : vector<16x128xf32> to vector<16x128xbf16>
    %c0_12 = arith.constant 0 : index
    %c0_13 = arith.constant 0 : index
    %18 = vector.load %arg6[%c0_12, %c0_13] : memref<128x128xbf16, #tpu.memory_space<vmem>>, vector<128x128xbf16>
    %cst_14 = arith.constant dense<0.000000e+00> : vector<16x128xf32>
    %19 = tpu.matmul %17, %18, %cst_14 {dimension_numbers = #tpu.dot_dimension_numbers<[1], [0], [0], [1], [0, 0, 1, 1], [], []>} : vector<16x128xbf16>, vector<128x128xbf16>, vector<16x128xf32> -> vector<16x128xf32>
    %c0_15 = arith.constant 0 : index
    %c0_16 = arith.constant 0 : index
    %20 = vector.load %arg7[%c0_15, %c0_16] : memref<1x128xf32, #tpu.memory_space<vmem>>, vector<1x128xf32>
    %21 = vector.broadcast %20 : vector<1x128xf32> to vector<16x128xf32>
    %22 = arith.addf %19, %21 : vector<16x128xf32>
    %cst_17 = arith.constant 0.000000e+00 : f32
    %23 = vector.broadcast %cst_17 : f32 to vector<16x128xf32>
    %24 = arith.maximumf %22, %23 : vector<16x128xf32>
    %25 = arith.truncf %24 : vector<16x128xf32> to vector<16x128xbf16>
    %c0_18 = arith.constant 0 : index
    %c0_19 = arith.constant 0 : index
    %26 = vector.load %arg8[%c0_18, %c0_19] : memref<128x128xbf16, #tpu.memory_space<vmem>>, vector<128x128xbf16>
    %cst_20 = arith.constant dense<0.000000e+00> : vector<16x128xf32>
    %27 = tpu.matmul %25, %26, %cst_20 {dimension_numbers = #tpu.dot_dimension_numbers<[1], [0], [0], [1], [0, 0, 1, 1], [], []>} : vector<16x128xbf16>, vector<128x128xbf16>, vector<16x128xf32> -> vector<16x128xf32>
    %c0_21 = arith.constant 0 : index
    %c0_22 = arith.constant 0 : index
    %28 = vector.load %arg9[%c0_21, %c0_22] : memref<1x128xf32, #tpu.memory_space<vmem>>, vector<1x128xf32>
    %29 = vector.broadcast %28 : vector<1x128xf32> to vector<16x128xf32>
    %30 = arith.addf %27, %29 : vector<16x128xf32>
    %31 = arith.truncf %30 : vector<16x128xf32> to vector<16x128xbf16>
    %c0_23 = arith.constant 0 : index
    %c0_24 = arith.constant 0 : index
    %32 = vector.load %arg10[%c0_23, %c0_24] : memref<16x128xbf16, #tpu.memory_space<vmem>>, vector<16x128xbf16>
    tpu.vector_store %arg10[%c0_23, %c0_24], %31 {strides = array<i32>} : memref<16x128xbf16, #tpu.memory_space<vmem>>, vector<16x128xbf16>,
    return
  }
  func.func @transform_0(%arg0: i32) -> (i32, i32) {
    %c0_i32 = arith.constant 0 : i32
    %c0_i32_0 = arith.constant 0 : i32
    return %arg0, %c0_i32 : i32, i32
  }
  func.func @transform_1(%arg0: i32) -> (i32, i32) {
    %c0_i32 = arith.constant 0 : i32
    %c0_i32_0 = arith.constant 0 : i32
    %c0_i32_1 = arith.constant 0 : i32
    return %c0_i32, %c0_i32_0 : i32, i32
  }
  func.func @transform_2(%arg0: i32) -> (i32, i32) {
    %c0_i32 = arith.constant 0 : i32
    %c0_i32_0 = arith.constant 0 : i32
    %c0_i32_1 = arith.constant 0 : i32
    return %c0_i32, %c0_i32_0 : i32, i32
  }
  func.func @transform_3(%arg0: i32) -> (i32, i32) {
    %c0_i32 = arith.constant 0 : i32
    %c0_i32_0 = arith.constant 0 : i32
    %c0_i32_1 = arith.constant 0 : i32
    return %c0_i32, %c0_i32_0 : i32, i32
  }
  func.func @transform_4(%arg0: i32) -> (i32, i32) {
    %c0_i32 = arith.constant 0 : i32
    %c0_i32_0 = arith.constant 0 : i32
    %c0_i32_1 = arith.constant 0 : i32
    return %c0_i32, %c0_i32_0 : i32, i32
  }
  func.func @transform_5(%arg0: i32) -> (i32, i32) {
    %c0_i32 = arith.constant 0 : i32
    %c0_i32_0 = arith.constant 0 : i32
    %c0_i32_1 = arith.constant 0 : i32
    return %c0_i32, %c0_i32_0 : i32, i32
  }
  func.func @transform_6(%arg0: i32) -> (i32, i32) {
    %c0_i32 = arith.constant 0 : i32
    %c0_i32_0 = arith.constant 0 : i32
    %c0_i32_1 = arith.constant 0 : i32
    return %c0_i32, %c0_i32_0 : i32, i32
  }
  func.func @transform_7(%arg0: i32) -> (i32, i32) {
    %c0_i32 = arith.constant 0 : i32
    %c0_i32_0 = arith.constant 0 : i32
    %c0_i32_1 = arith.constant 0 : i32
    return %c0_i32, %c0_i32_0 : i32, i32
  }
  func.func @transform_8(%arg0: i32) -> (i32, i32) {
    %c0_i32 = arith.constant 0 : i32
    %c0_i32_0 = arith.constant 0 : i32
    %c0_i32_1 = arith.constant 0 : i32
    return %c0_i32, %c0_i32_0 : i32, i32
  }
  func.func @transform_9(%arg0: i32) -> (i32, i32) {
    %c0_i32 = arith.constant 0 : i32
    %c0_i32_0 = arith.constant 0 : i32
    return %arg0, %c0_i32 : i32, i32
  }
}

</mosaic_0001>

<llo_original>
// kernel: tpu_custom_call.1
$region0: #{tpu_custom_call.1}
  #allocation0 [shape = 'u32[]', space=smem, size = 0x4, offset = 0x4, fixed_abs, tag = 'smem constant byte address 0x4 - core index']
  #allocation1 [shape = 'u32[144,128]{1,0:T(1,128)}', space=vmem, size = 0x12000, scoped, tag = 'internal scratch']
  %s0 = inlined_call_operand.hbm [shape: f32[2,784], index: 0, kind: input, shape index: {}]
  %s1 = inlined_call_operand.hbm [shape: bf16[784,128], index: 1, kind: input, shape index: {}]
  %s2 = inlined_call_operand.vmem [shape: f32[1,128], index: 2, kind: input, shape index: {}]
  %s3 = inlined_call_operand.hbm [shape: bf16[128,128], index: 3, kind: input, shape index: {}]
  %s4 = inlined_call_operand.vmem [shape: f32[1,128], index: 4, kind: input, shape index: {}]
  %s5 = inlined_call_operand.hbm [shape: bf16[128,128], index: 5, kind: input, shape index: {}]
  %s6 = inlined_call_operand.vmem [shape: f32[1,128], index: 6, kind: input, shape index: {}]
  %s7 = inlined_call_operand.hbm [shape: bf16[128,128], index: 7, kind: input, shape index: {}]
  %s8 = inlined_call_operand.vmem [shape: f32[1,128], index: 8, kind: input, shape index: {}]
  %s9 = inlined_call_operand.hbm [shape: bf16[2,128], index: 9, kind: output, shape index: {}]
  %s10 = sld [smem:[#allocation0]]
  $region66: #{tpu_custom_call.1} parent=0
    _
  %s12 = ssub.s32 1, %s10
  %s13 = scalar_select 0, %s12, %s10
  $region1: #{tpu_custom_call.1} parent=0
    #allocation2 [shape = 'u8[57344]{0}', space=vmem, size = 0xe000, scoped, tag = 'input window, operand 0, single buffered']
    #allocation3 [shape = 's32[1]{0}', space=sflag, size = 0x4, scoped, tag = 'scoped memory for tpu_custom_call.1']
    #allocation4 [shape = 's32[1]{0}', space=sflag, size = 0x4, scoped, tag = 'scoped memory for tpu_custom_call.1']
    #allocation5 [shape = 'u8[200704]{0}', space=vmem, size = 0x31000, scoped, tag = 'input window, operand 1, single buffered']
    #allocation6 [shape = 's32[1]{0}', space=sflag, size = 0x4, scoped, tag = 'scoped memory for tpu_custom_call.1']
    #allocation7 [shape = 'u8[32768]{0}', space=vmem, size = 0x8000, scoped, tag = 'input window, operand 3, single buffered']
    #allocation8 [shape = 'u8[32768]{0}', space=vmem, size = 0x8000, scoped, tag = 'input window, operand 5, single buffered']
    #allocation9 [shape = 's32[1]{0}', space=sflag, size = 0x4, scoped, tag = 'scoped memory for tpu_custom_call.1']
    #allocation10 [shape = 'u8[32768]{0}', space=vmem, size = 0x8000, scoped, tag = 'input window, operand 7, single buffered']
    #allocation11 [shape = 'u8[4096]{0}', space=vmem, size = 0x1000, scoped, tag = 'output window, operand 0, single buffered']
    %14 = vsyncpa [#allocation3], 0
    %15 = vsyncpa [#allocation6], 0
    %16 = vsyncpa [#allocation9], 0
    %17 = vsyncpa [#allocation4], 0
    // Predicated region
    $region2: #{tpu_custom_call.1} parent=1 // pred_check
      _
    $region3: #{tpu_custom_call.1} parent=1 // pred_check_branch
      %19 = sbr.rel (0) target = $region5
    $region4: #{tpu_custom_call.1} parent=1 // pred_region
      %s21 = ssub.s32 1792, 224
      %22 = vsyncadd [#allocation3], %s21
      %s23 = sshll.u32 [#allocation2], 4
      %s24 = int_to_ptr.vmem [resolvable:$true] %s23
      %29 = dma.hbm_to_vmem [thread:$0]  %s0, 224, %s24, [#allocation3], 224, 224, 14
    $region5: #{tpu_custom_call.1} parent=1 // pred_fallthru
      _
    // Predicated region
    $region6: #{tpu_custom_call.1} parent=1 // pred_check
      _
    $region7: #{tpu_custom_call.1} parent=1 // pred_check_branch
      %31 = sbr.rel (0) target = $region9
    $region8: #{tpu_custom_call.1} parent=1 // pred_region
      %s33 = ssub.s32 6272, 6272
      %34 = vsyncadd [#allocation6], %s33
      %s35 = sshll.u32 [#allocation5], 4
      %s36 = int_to_ptr.vmem [resolvable:$true] %s35
      %41 = dma.hbm_to_vmem [thread:$0]  %s1, 6272, %s36, [#allocation6], 64, 64, 4
    $region9: #{tpu_custom_call.1} parent=1 // pred_fallthru
      _
    // Predicated region
    $region10: #{tpu_custom_call.1} parent=1 // pred_check
      _
    $region11: #{tpu_custom_call.1} parent=1 // pred_check_branch
      %43 = sbr.rel (0) target = $region13
    $region12: #{tpu_custom_call.1} parent=1 // pred_region
      _
    $region13: #{tpu_custom_call.1} parent=1 // pred_fallthru
      _
    // Predicated region
    $region14: #{tpu_custom_call.1} parent=1 // pred_check
      _
    $region15: #{tpu_custom_call.1} parent=1 // pred_check_branch
      %45 = sbr.rel (0) target = $region17
    $region16: #{tpu_custom_call.1} parent=1 // pred_region
      %s47 = ssub.s32 1024, 1024
      %48 = vsyncadd [#allocation6], %s47
      %s49 = sshll.u32 [#allocation7], 4
      %s50 = int_to_ptr.vmem [resolvable:$true] %s49
      %55 = dma.hbm_to_vmem [thread:$0]  %s3, 1024, %s50, [#allocation6], 64, 64, 4
    $region17: #{tpu_custom_call.1} parent=1 // pred_fallthru
      _
    // Predicated region
    $region18: #{tpu_custom_call.1} parent=1 // pred_check
      _
    $region19: #{tpu_custom_call.1} parent=1 // pred_check_branch
      %57 = sbr.rel (0) target = $region21
    $region20: #{tpu_custom_call.1} parent=1 // pred_region
      _
    $region21: #{tpu_custom_call.1} parent=1 // pred_fallthru
      _
    // Predicated region
    $region22: #{tpu_custom_call.1} parent=1 // pred_check
      _
    $region23: #{tpu_custom_call.1} parent=1 // pred_check_branch
      %59 = sbr.rel (0) target = $region25
    $region24: #{tpu_custom_call.1} parent=1 // pred_region
      %s61 = ssub.s32 1024, 1024
      %62 = vsyncadd [#allocation9], %s61
      %s63 = sshll.u32 [#allocation8], 4
      %s64 = int_to_ptr.vmem [resolvable:$true] %s63
      %69 = dma.hbm_to_vmem [thread:$0]  %s5, 1024, %s64, [#allocation9], 64, 64, 4
    $region25: #{tpu_custom_call.1} parent=1 // pred_fallthru
      _
    // Predicated region
    $region26: #{tpu_custom_call.1} parent=1 // pred_check
      _
    $region27: #{tpu_custom_call.1} parent=1 // pred_check_branch
      %71 = sbr.rel (0) target = $region29
    $region28: #{tpu_custom_call.1} parent=1 // pred_region
      _
    $region29: #{tpu_custom_call.1} parent=1 // pred_fallthru
      _
    // Predicated region
    $region30: #{tpu_custom_call.1} parent=1 // pred_check
      _
    $region31: #{tpu_custom_call.1} parent=1 // pred_check_branch
      %73 = sbr.rel (0) target = $region33
    $region32: #{tpu_custom_call.1} parent=1 // pred_region
      %s75 = ssub.s32 1024, 1024
      %76 = vsyncadd [#allocation9], %s75
      %s77 = sshll.u32 [#allocation10], 4
      %s78 = int_to_ptr.vmem [resolvable:$true] %s77
      %83 = dma.hbm_to_vmem [thread:$0]  %s7, 1024, %s78, [#allocation9], 64, 64, 4
    $region33: #{tpu_custom_call.1} parent=1 // pred_fallthru
      _
    // Predicated region
    $region34: #{tpu_custom_call.1} parent=1 // pred_check
      _
    $region35: #{tpu_custom_call.1} parent=1 // pred_check_branch
      %85 = sbr.rel (0) target = $region37
    $region36: #{tpu_custom_call.1} parent=1 // pred_region
      _
    $region37: #{tpu_custom_call.1} parent=1 // pred_fallthru
      _
    // Predicated region
    $region38: #{tpu_custom_call.1} parent=1 // pred_check
      _
    $region39: #{tpu_custom_call.1} parent=1 // pred_check_branch
      %87 = sbr.rel (0) target = $region41
    $region40: #{tpu_custom_call.1} parent=1 // pred_region
      %88 = dma.done [#allocation3], 1792
    $region41: #{tpu_custom_call.1} parent=1 // pred_fallthru
      _
    // Predicated region
    $region42: #{tpu_custom_call.1} parent=1 // pred_check
      _
    $region43: #{tpu_custom_call.1} parent=1 // pred_check_branch
      %90 = sbr.rel (0) target = $region45
    $region44: #{tpu_custom_call.1} parent=1 // pred_region
      %91 = dma.done [#allocation6], 6272
    $region45: #{tpu_custom_call.1} parent=1 // pred_fallthru
      _
    // Predicated region
    $region46: #{tpu_custom_call.1} parent=1 // pred_check
      _
    $region47: #{tpu_custom_call.1} parent=1 // pred_check_branch
      %93 = sbr.rel (0) target = $region49
    $region48: #{tpu_custom_call.1} parent=1 // pred_region
      %94 = dma.done [#allocation6], 1024
    $region49: #{tpu_custom_call.1} parent=1 // pred_fallthru
      _
    // Predicated region
    $region50: #{tpu_custom_call.1} parent=1 // pred_check
      _
    $region51: #{tpu_custom_call.1} parent=1 // pred_check_branch
      %96 = sbr.rel (0) target = $region53
    $region52: #{tpu_custom_call.1} parent=1 // pred_region
      %97 = dma.done [#allocation9], 1024
    $region53: #{tpu_custom_call.1} parent=1 // pred_fallthru
      _
    // Predicated region
    $region54: #{tpu_custom_call.1} parent=1 // pred_check
      _
    $region55: #{tpu_custom_call.1} parent=1 // pred_check_branch
      %99 = sbr.rel (0) target = $region57
    $region56: #{tpu_custom_call.1} parent=1 // pred_region
      %100 = dma.done [#allocation9], 1024
    $region57: #{tpu_custom_call.1} parent=1 // pred_fallthru
      _
    %v102 = vld [vmem:[#allocation2] sm:$0xff]
    %v103 = vld [vmem:[#allocation2 + $0x8] sm:$0x3f]
    %v104 = vld [vmem:[#allocation2 + $0xe] sm:$0xff]
    %v105 = vld [vmem:[#allocation2 + $0x16] sm:$0x3f]
    %v106 = vld [vmem:[#allocation2 + $0x1c] sm:$0xff]
    %v107 = vld [vmem:[#allocation2 + $0x24] sm:$0x3f]
    %v108 = vld [vmem:[#allocation2 + $0x2a] sm:$0xff]
    %v109 = vld [vmem:[#allocation2 + $0x32] sm:$0x3f]
    %v110 = vld [vmem:[#allocation2 + $0x38] sm:$0xff]
    %v111 = vld [vmem:[#allocation2 + $0x40] sm:$0x3f]
    %v112 = vld [vmem:[#allocation2 + $0x46] sm:$0xff]
    %v113 = vld [vmem:[#allocation2 + $0x4e] sm:$0x3f]
    %v114 = vld [vmem:[#allocation2 + $0x54] sm:$0xff]
    %v115 = vld [vmem:[#allocation2 + $0x5c] sm:$0x3f]
    %v116 = vld [vmem:[#allocation2 + $0x62] sm:$0xff]
    %v117 = vld [vmem:[#allocation2 + $0x6a] sm:$0x3f]
    %v134 = vcombine.low %v102, %v104
    %v135 = vcombine.high %v102, %v104
    %v136 = vcombine.low %v106, %v108
    %v137 = vcombine.high %v106, %v108
    %v139 = vunpack.c.l.s4 1983009808
    %v140 = vunpack.c.0.s8 %v139
    %v141 = vlaneseq
    %v142 = vshrl.u32 %v141, 7
    %v143 = vsub.s32 %v140, %v142
    %v144 = vrot.slane %v134, %v143
    %v146 = vunpack.c.l.s4 1983009808
    %v147 = vunpack.c.0.s8 %v146
    %v148 = vlaneseq
    %v149 = vshrl.u32 %v148, 7
    %v150 = vsub.s32 %v147, %v149
    %v151 = vrot.slane %v135, %v150
    %v153 = vunpack.c.l.s4 1983009808
    %v154 = vunpack.c.0.s8 %v153
    %v155 = vlaneseq
    %v156 = vshrl.u32 %v155, 7
    %v157 = vsub.s32 %v154, %v156
    %v158 = vrot.slane %v136, %v157
    %v160 = vunpack.c.l.s4 1983009808
    %v161 = vunpack.c.0.s8 %v160
    %v162 = vlaneseq
    %v163 = vshrl.u32 %v162, 7
    %v164 = vsub.s32 %v161, %v163
    %v165 = vrot.slane %v137, %v164
    %v166 = vcombine.low %v144, %v158
    %v167 = vcombine.high %v144, %v158
    %v168 = vcombine.low %v151, %v165
    %v169 = vcombine.high %v151, %v165
    %v170 = vcombine.low %v103, %v105
    %v171 = vcombine.high %v103, %v105
    %v172 = vcombine.low %v107, %v109
    %v173 = vcombine.high %v107, %v109
    %v175 = vunpack.c.l.s4 1983009808
    %v176 = vunpack.c.0.s8 %v175
    %v177 = vlaneseq
    %v178 = vshrl.u32 %v177, 7
    %v179 = vsub.s32 %v176, %v178
    %v180 = vrot.slane %v170, %v179
    %v182 = vunpack.c.l.s4 1983009808
    %v183 = vunpack.c.0.s8 %v182
    %v184 = vlaneseq
    %v185 = vshrl.u32 %v184, 7
    %v186 = vsub.s32 %v183, %v185
    %v187 = vrot.slane %v171, %v186
    %v189 = vunpack.c.l.s4 1983009808
    %v190 = vunpack.c.0.s8 %v189
    %v191 = vlaneseq
    %v192 = vshrl.u32 %v191, 7
    %v193 = vsub.s32 %v190, %v192
    %v194 = vrot.slane %v172, %v193
    %v196 = vunpack.c.l.s4 1983009808
    %v197 = vunpack.c.0.s8 %v196
    %v198 = vlaneseq
    %v199 = vshrl.u32 %v198, 7
    %v200 = vsub.s32 %v197, %v199
    %v201 = vrot.slane %v173, %v200
    %v202 = vcombine.low %v180, %v194
    %v203 = vcombine.high %v180, %v194
    %v204 = vcombine.low %v187, %v201
    %v205 = vcombine.low %v110, %v112
    %v206 = vcombine.high %v110, %v112
    %v207 = vcombine.low %v114, %v116
    %v208 = vcombine.high %v114, %v116
    %v210 = vunpack.c.l.s4 1983009808
    %v211 = vunpack.c.0.s8 %v210
    %v212 = vlaneseq
    %v213 = vshrl.u32 %v212, 7
    %v214 = vsub.s32 %v211, %v213
    %v215 = vrot.slane %v205, %v214
    %v217 = vunpack.c.l.s4 1983009808
    %v218 = vunpack.c.0.s8 %v217
    %v219 = vlaneseq
    %v220 = vshrl.u32 %v219, 7
    %v221 = vsub.s32 %v218, %v220
    %v222 = vrot.slane %v206, %v221
    %v224 = vunpack.c.l.s4 1983009808
    %v225 = vunpack.c.0.s8 %v224
    %v226 = vlaneseq
    %v227 = vshrl.u32 %v226, 7
    %v228 = vsub.s32 %v225, %v227
    %v229 = vrot.slane %v207, %v228
    %v231 = vunpack.c.l.s4 1983009808
    %v232 = vunpack.c.0.s8 %v231
    %v233 = vlaneseq
    %v234 = vshrl.u32 %v233, 7
    %v235 = vsub.s32 %v232, %v234
    %v236 = vrot.slane %v208, %v235
    %v237 = vcombine.low %v215, %v229
    %v238 = vcombine.high %v215, %v229
    %v239 = vcombine.low %v222, %v236
    %v240 = vcombine.high %v222, %v236
    %v241 = vcombine.low %v111, %v113
    %v242 = vcombine.high %v111, %v113
    %v243 = vcombine.low %v115, %v117
    %v244 = vcombine.high %v115, %v117
    %v246 = vunpack.c.l.s4 1983009808
    %v247 = vunpack.c.0.s8 %v246
    %v248 = vlaneseq
    %v249 = vshrl.u32 %v248, 7
    %v250 = vsub.s32 %v247, %v249
    %v251 = vrot.slane %v241, %v250
    %v253 = vunpack.c.l.s4 1983009808
    %v254 = vunpack.c.0.s8 %v253
    %v255 = vlaneseq
    %v256 = vshrl.u32 %v255, 7
    %v257 = vsub.s32 %v254, %v256
    %v258 = vrot.slane %v242, %v257
    %v260 = vunpack.c.l.s4 1983009808
    %v261 = vunpack.c.0.s8 %v260
    %v262 = vlaneseq
    %v263 = vshrl.u32 %v262, 7
    %v264 = vsub.s32 %v261, %v263
    %v265 = vrot.slane %v243, %v264
    %v267 = vunpack.c.l.s4 1983009808
    %v268 = vunpack.c.0.s8 %v267
    %v269 = vlaneseq
    %v270 = vshrl.u32 %v269, 7
    %v271 = vsub.s32 %v268, %v270
    %v272 = vrot.slane %v244, %v271
    %v273 = vcombine.low %v251, %v265
    %v274 = vcombine.high %v251, %v265
    %v275 = vcombine.low %v258, %v272
    %v290 = vpack.c.bf16 %v237, %v166
    %v291 = vpack.c.bf16 %v238, %v167
    %v292 = vpack.c.bf16 %v239, %v168
    %v293 = vpack.c.bf16 %v240, %v169
    %v294 = vpack.c.bf16 %v273, %v202
    %v295 = vpack.c.bf16 %v274, %v203
    %v296 = vpack.c.bf16 %v275, %v204
    %v297 = vld [vmem:[#allocation5] sm:$0xf]
    %v298 = vld [vmem:[#allocation5 + $0x4] sm:$0xf]
    %v299 = vld [vmem:[#allocation5 + $0x8] sm:$0xf]
    %v300 = vld [vmem:[#allocation5 + $0xc] sm:$0xf]
    %v301 = vld [vmem:[#allocation5 + $0x10] sm:$0xf]
    %v302 = vld [vmem:[#allocation5 + $0x14] sm:$0xf]
    %v303 = vld [vmem:[#allocation5 + $0x18] sm:$0xf]
    %v304 = vld [vmem:[#allocation5 + $0x1c] sm:$0xf]
    %v305 = vld [vmem:[#allocation5 + $0x20] sm:$0xf]
    %v306 = vld [vmem:[#allocation5 + $0x24] sm:$0xf]
    %v307 = vld [vmem:[#allocation5 + $0x28] sm:$0xf]
    %v308 = vld [vmem:[#allocation5 + $0x2c] sm:$0xf]
    %v309 = vld [vmem:[#allocation5 + $0x30] sm:$0xf]
    %v310 = vld [vmem:[#allocation5 + $0x34] sm:$0xf]
    %v311 = vld [vmem:[#allocation5 + $0x38] sm:$0xf]
    %v312 = vld [vmem:[#allocation5 + $0x3c] sm:$0xf]
    %v313 = vld [vmem:[#allocation5 + $0x40] sm:$0xf]
    %v314 = vld [vmem:[#allocation5 + $0x44] sm:$0xf]
    %v315 = vld [vmem:[#allocation5 + $0x48] sm:$0xf]
    %v316 = vld [vmem:[#allocation5 + $0x4c] sm:$0xf]
    %v317 = vld [vmem:[#allocation5 + $0x50] sm:$0xf]
    %v318 = vld [vmem:[#allocation5 + $0x54] sm:$0xf]
    %v319 = vld [vmem:[#allocation5 + $0x58] sm:$0xf]
    %v320 = vld [vmem:[#allocation5 + $0x5c] sm:$0xf]
    %v321 = vld [vmem:[#allocation5 + $0x60] sm:$0xf]
    %v322 = vld [vmem:[#allocation5 + $0x64] sm:$0xf]
    %v323 = vld [vmem:[#allocation5 + $0x68] sm:$0xf]
    %v324 = vld [vmem:[#allocation5 + $0x6c] sm:$0xf]
    %v325 = vld [vmem:[#allocation5 + $0x70] sm:$0xf]
    %v326 = vld [vmem:[#allocation5 + $0x74] sm:$0xf]
    %v327 = vld [vmem:[#allocation5 + $0x78] sm:$0xf]
    %v328 = vld [vmem:[#allocation5 + $0x7c] sm:$0xf]
    %v329 = vld [vmem:[#allocation5 + $0x80] sm:$0xf]
    %v330 = vld [vmem:[#allocation5 + $0x84] sm:$0xf]
    %v331 = vld [vmem:[#allocation5 + $0x88] sm:$0xf]
    %v332 = vld [vmem:[#allocation5 + $0x8c] sm:$0xf]
    %v333 = vld [vmem:[#allocation5 + $0x90] sm:$0xf]
    %v334 = vld [vmem:[#allocation5 + $0x94] sm:$0xf]
    %v335 = vld [vmem:[#allocation5 + $0x98] sm:$0xf]
    %v336 = vld [vmem:[#allocation5 + $0x9c] sm:$0xf]
    %v337 = vld [vmem:[#allocation5 + $0xa0] sm:$0xf]
    %v338 = vld [vmem:[#allocation5 + $0xa4] sm:$0xf]
    %v339 = vld [vmem:[#allocation5 + $0xa8] sm:$0xf]
    %v340 = vld [vmem:[#allocation5 + $0xac] sm:$0xf]
    %v341 = vld [vmem:[#allocation5 + $0xb0] sm:$0xf]
    %v342 = vld [vmem:[#allocation5 + $0xb4] sm:$0xf]
    %v343 = vld [vmem:[#allocation5 + $0xb8] sm:$0xf]
    %v344 = vld [vmem:[#allocation5 + $0xbc] sm:$0xf]
    %v345 = vld [vmem:[#allocation5 + $0xc0] sm:$0xf]
    %v346 = vld [vmem:[#allocation5 + $0xc4] sm:$0xf]
    %v347 = vld [vmem:[#allocation5 + $0xc8] sm:$0xf]
    %v348 = vld [vmem:[#allocation5 + $0xcc] sm:$0xf]
    %v349 = vld [vmem:[#allocation5 + $0xd0] sm:$0xf]
    %v350 = vld [vmem:[#allocation5 + $0xd4] sm:$0xf]
    %v351 = vld [vmem:[#allocation5 + $0xd8] sm:$0xf]
    %v352 = vld [vmem:[#allocation5 + $0xdc] sm:$0xf]
    %v353 = vld [vmem:[#allocation5 + $0xe0] sm:$0xf]
    %v354 = vld [vmem:[#allocation5 + $0xe4] sm:$0xf]
    %v355 = vld [vmem:[#allocation5 + $0xe8] sm:$0xf]
    %v356 = vld [vmem:[#allocation5 + $0xec] sm:$0xf]
    %v357 = vld [vmem:[#allocation5 + $0xf0] sm:$0xf]
    %v358 = vld [vmem:[#allocation5 + $0xf4] sm:$0xf]
    %v359 = vld [vmem:[#allocation5 + $0xf8] sm:$0xf]
    %v360 = vld [vmem:[#allocation5 + $0xfc] sm:$0xf]
    %v361 = vld [vmem:[#allocation5 + $0x100] sm:$0xf]
    %v362 = vld [vmem:[#allocation5 + $0x104] sm:$0xf]
    %v363 = vld [vmem:[#allocation5 + $0x108] sm:$0xf]
    %v364 = vld [vmem:[#allocation5 + $0x10c] sm:$0xf]
    %v365 = vld [vmem:[#allocation5 + $0x110] sm:$0xf]
    %v366 = vld [vmem:[#allocation5 + $0x114] sm:$0xf]
    %v367 = vld [vmem:[#allocation5 + $0x118] sm:$0xf]
    %v368 = vld [vmem:[#allocation5 + $0x11c] sm:$0xf]
    %v369 = vld [vmem:[#allocation5 + $0x120] sm:$0xf]
    %v370 = vld [vmem:[#allocation5 + $0x124] sm:$0xf]
    %v371 = vld [vmem:[#allocation5 + $0x128] sm:$0xf]
    %v372 = vld [vmem:[#allocation5 + $0x12c] sm:$0xf]
    %v373 = vld [vmem:[#allocation5 + $0x130] sm:$0xf]
    %v374 = vld [vmem:[#allocation5 + $0x134] sm:$0xf]
    %v375 = vld [vmem:[#allocation5 + $0x138] sm:$0xf]
    %v376 = vld [vmem:[#allocation5 + $0x13c] sm:$0xf]
    %v377 = vld [vmem:[#allocation5 + $0x140] sm:$0xf]
    %v378 = vld [vmem:[#allocation5 + $0x144] sm:$0xf]
    %v379 = vld [vmem:[#allocation5 + $0x148] sm:$0xf]
    %v380 = vld [vmem:[#allocation5 + $0x14c] sm:$0xf]
    %v381 = vld [vmem:[#allocation5 + $0x150] sm:$0xf]
    %v382 = vld [vmem:[#allocation5 + $0x154] sm:$0xf]
    %v383 = vld [vmem:[#allocation5 + $0x158] sm:$0xf]
    %v384 = vld [vmem:[#allocation5 + $0x15c] sm:$0xf]
    %v385 = vld [vmem:[#allocation5 + $0x160] sm:$0xf]
    %v386 = vld [vmem:[#allocation5 + $0x164] sm:$0xf]
    %v387 = vld [vmem:[#allocation5 + $0x168] sm:$0xf]
    %v388 = vld [vmem:[#allocation5 + $0x16c] sm:$0xf]
    %v389 = vld [vmem:[#allocation5 + $0x170] sm:$0xf]
    %v390 = vld [vmem:[#allocation5 + $0x174] sm:$0xf]
    %v391 = vld [vmem:[#allocation5 + $0x178] sm:$0xf]
    %v392 = vld [vmem:[#allocation5 + $0x17c] sm:$0xf]
    %v393 = vld [vmem:[#allocation5 + $0x180] sm:$0xf]
    %v394 = vld [vmem:[#allocation5 + $0x184] sm:$0xf]
    %v395 = vld [vmem:[%s2] sm:$0x1]
    %v397 = vlaneseq
    %v398 = vshrl.u32 %v397, 7
    %v399 = vsub.s32 0, %v398
    %v400 = vrot.slane %v395, %v399
    %v500 = vunpack.c.l.b16 %v297
    %v501 = vunpack.c.l.b16 %v298
    %v502 = vunpack.c.l.b16 %v299
    %v503 = vunpack.c.l.b16 %v300
    %v504 = vunpack.c.l.b16 %v301
    %v505 = vunpack.c.l.b16 %v302
    %v506 = vunpack.c.l.b16 %v303
    %v507 = vunpack.c.l.b16 %v304
    %v508 = vunpack.c.l.b16 %v305
    %v509 = vunpack.c.l.b16 %v306
    %v510 = vunpack.c.l.b16 %v307
    %v511 = vunpack.c.l.b16 %v308
    %v512 = vunpack.c.l.b16 %v309
    %v513 = vunpack.c.l.b16 %v310
    %v514 = vunpack.c.l.b16 %v311
    %v515 = vunpack.c.l.b16 %v312
    %v516 = vunpack.c.l.b16 %v313
    %v517 = vunpack.c.l.b16 %v314
    %v518 = vunpack.c.l.b16 %v315
    %v519 = vunpack.c.l.b16 %v316
    %v520 = vunpack.c.l.b16 %v317
    %v521 = vunpack.c.l.b16 %v318
    %v522 = vunpack.c.l.b16 %v319
    %v523 = vunpack.c.l.b16 %v320
    %v524 = vunpack.c.l.b16 %v321
    %v525 = vunpack.c.l.b16 %v322
    %v526 = vunpack.c.l.b16 %v323
    %v527 = vunpack.c.l.b16 %v324
    %v528 = vunpack.c.l.b16 %v325
    %v529 = vunpack.c.l.b16 %v326
    %v530 = vunpack.c.l.b16 %v327
    %v531 = vunpack.c.l.b16 %v328
    %v532 = vunpack.c.l.b16 %v329
    %v533 = vunpack.c.l.b16 %v330
    %v534 = vunpack.c.l.b16 %v331
    %v535 = vunpack.c.l.b16 %v332
    %v536 = vunpack.c.l.b16 %v333
    %v537 = vunpack.c.l.b16 %v334
    %v538 = vunpack.c.l.b16 %v335
    %v539 = vunpack.c.l.b16 %v336
    %v540 = vunpack.c.l.b16 %v337
    %v541 = vunpack.c.l.b16 %v338
    %v542 = vunpack.c.l.b16 %v339
    %v543 = vunpack.c.l.b16 %v340
    %v544 = vunpack.c.l.b16 %v341
    %v545 = vunpack.c.l.b16 %v342
    %v546 = vunpack.c.l.b16 %v343
    %v547 = vunpack.c.l.b16 %v344
    %v548 = vunpack.c.l.b16 %v345
    %v549 = vunpack.c.l.b16 %v346
    %v550 = vunpack.c.l.b16 %v347
    %v551 = vunpack.c.l.b16 %v348
    %v552 = vunpack.c.l.b16 %v349
    %v553 = vunpack.c.l.b16 %v350
    %v554 = vunpack.c.l.b16 %v351
    %v555 = vunpack.c.l.b16 %v352
    %v556 = vunpack.c.l.b16 %v353
    %v557 = vunpack.c.l.b16 %v354
    %v558 = vunpack.c.l.b16 %v355
    %v559 = vunpack.c.l.b16 %v356
    %v560 = vunpack.c.l.b16 %v357
    %v561 = vunpack.c.l.b16 %v358
    %v562 = vunpack.c.l.b16 %v359
    %v563 = vunpack.c.l.b16 %v360
    %v564 = vunpack.c.l.b16 %v361
    %v565 = vunpack.c.l.b16 %v362
    %v566 = vunpack.c.l.b16 %v363
    %v567 = vunpack.c.l.b16 %v364
    %v568 = vunpack.c.l.b16 %v365
    %v569 = vunpack.c.l.b16 %v366
    %v570 = vunpack.c.l.b16 %v367
    %v571 = vunpack.c.l.b16 %v368
    %v572 = vunpack.c.l.b16 %v369
    %v573 = vunpack.c.l.b16 %v370
    %v574 = vunpack.c.l.b16 %v371
    %v575 = vunpack.c.l.b16 %v372
    %v576 = vunpack.c.l.b16 %v373
    %v577 = vunpack.c.l.b16 %v374
    %v578 = vunpack.c.l.b16 %v375
    %v579 = vunpack.c.l.b16 %v376
    %v580 = vunpack.c.l.b16 %v377
    %v581 = vunpack.c.l.b16 %v378
    %v582 = vunpack.c.l.b16 %v379
    %v583 = vunpack.c.l.b16 %v380
    %v584 = vunpack.c.l.b16 %v381
    %v585 = vunpack.c.l.b16 %v382
    %v586 = vunpack.c.l.b16 %v383
    %v587 = vunpack.c.l.b16 %v384
    %v588 = vunpack.c.l.b16 %v385
    %v589 = vunpack.c.l.b16 %v386
    %v590 = vunpack.c.l.b16 %v387
    %v591 = vunpack.c.l.b16 %v388
    %v592 = vunpack.c.l.b16 %v389
    %v593 = vunpack.c.l.b16 %v390
    %v594 = vunpack.c.l.b16 %v391
    %v595 = vunpack.c.l.b16 %v392
    %v596 = vunpack.c.l.b16 %v393
    %v597 = vunpack.c.l.b16 %v394
    %v598 = vpack.c.b16 %v501, %v500
    %v599 = vpack.c.b16 %v503, %v502
    %v600 = vpack.c.b16 %v505, %v504
    %v601 = vpack.c.b16 %v507, %v506
    %v602 = vpack.c.b16 %v509, %v508
    %v603 = vpack.c.b16 %v511, %v510
    %v604 = vpack.c.b16 %v513, %v512
    %v605 = vpack.c.b16 %v515, %v514
    %v606 = vpack.c.b16 %v517, %v516
    %v607 = vpack.c.b16 %v519, %v518
    %v608 = vpack.c.b16 %v521, %v520
    %v609 = vpack.c.b16 %v523, %v522
    %v610 = vpack.c.b16 %v525, %v524
    %v611 = vpack.c.b16 %v527, %v526
    %v612 = vpack.c.b16 %v529, %v528
    %v613 = vpack.c.b16 %v531, %v530
    %v614 = vpack.c.b16 %v533, %v532
    %v615 = vpack.c.b16 %v535, %v534
    %v616 = vpack.c.b16 %v537, %v536
    %v617 = vpack.c.b16 %v539, %v538
    %v618 = vpack.c.b16 %v541, %v540
    %v619 = vpack.c.b16 %v543, %v542
    %v620 = vpack.c.b16 %v545, %v544
    %v621 = vpack.c.b16 %v547, %v546
    %v622 = vpack.c.b16 %v549, %v548
    %v623 = vpack.c.b16 %v551, %v550
    %v624 = vpack.c.b16 %v553, %v552
    %v625 = vpack.c.b16 %v555, %v554
    %v626 = vpack.c.b16 %v557, %v556
    %v627 = vpack.c.b16 %v559, %v558
    %v628 = vpack.c.b16 %v561, %v560
    %v629 = vpack.c.b16 %v563, %v562
    %v630 = vpack.c.b16 %v565, %v564
    %v631 = vpack.c.b16 %v567, %v566
    %v632 = vpack.c.b16 %v569, %v568
    %v633 = vpack.c.b16 %v571, %v570
    %v634 = vpack.c.b16 %v573, %v572
    %v635 = vpack.c.b16 %v575, %v574
    %v636 = vpack.c.b16 %v577, %v576
    %v637 = vpack.c.b16 %v579, %v578
    %v638 = vpack.c.b16 %v581, %v580
    %v639 = vpack.c.b16 %v583, %v582
    %v640 = vpack.c.b16 %v585, %v584
    %v641 = vpack.c.b16 %v587, %v586
    %v642 = vpack.c.b16 %v589, %v588
    %v643 = vpack.c.b16 %v591, %v590
    %v644 = vpack.c.b16 %v593, %v592
    %v645 = vpack.c.b16 %v595, %v594
    %v646 = vpack.c.b16 %v597, %v596
    %vm696 = vcmask 130048
    %v698 = vsel %vm696, %v296, 0
    %700 = vmatprep.subr.bf16.mxu0 0
    %701 = vmatpush1.bf16.msra.mxu0 %v598
    %702 = vmatprep.subr.bf16.mxu0 0
    %703 = vmatpush1.bf16.msra.mxu0 %v599
    %704 = vmatprep.subr.bf16.mxu0 0
    %705 = vmatpush1.bf16.msra.mxu0 %v600
    %706 = vmatprep.subr.bf16.mxu0 0
    %707 = vmatpush1.bf16.msra.mxu0 %v601
    %708 = vmatprep.subr.bf16.mxu0 0
    %709 = vmatpush1.bf16.msra.mxu0 %v602
    %710 = vmatprep.subr.bf16.mxu0 0
    %711 = vmatpush1.bf16.msra.mxu0 %v603
    %712 = vmatprep.subr.bf16.mxu0 0
    %713 = vmatpush1.bf16.msra.mxu0 %v604
    %714 = vmatprep.subr.bf16.mxu0 0
    %715 = vmatpush1.bf16.msra.mxu0 %v605
    %716 = vmatprep.subr.bf16.mxu0 0
    %717 = vmatpush1.bf16.msra.mxu0 %v606
    %718 = vmatprep.subr.bf16.mxu0 0
    %719 = vmatpush1.bf16.msra.mxu0 %v607
    %720 = vmatprep.subr.bf16.mxu0 0
    %721 = vmatpush1.bf16.msra.mxu0 %v608
    %722 = vmatprep.subr.bf16.mxu0 0
    %723 = vmatpush1.bf16.msra.mxu0 %v609
    %724 = vmatprep.subr.bf16.mxu0 0
    %725 = vmatpush1.bf16.msra.mxu0 %v610
    %726 = vmatprep.subr.bf16.mxu0 0
    %727 = vmatpush1.bf16.msra.mxu0 %v611
    %728 = vmatprep.subr.bf16.mxu0 0
    %729 = vmatpush1.bf16.msra.mxu0 %v612
    %730 = vmatprep.subr.bf16.mxu0 0
    %731 = vmatpush1.bf16.msra.mxu0 %v613
    %732 = vmatprep.mubr.bf16.mxu0 %v291
    %733 = vmatmul.mubr.bf16.gmra.mrb[0].mxu0 %v290
    %v734 = vpop.f32.mrb[0].mxu0
    %v735 = vadd.f32 %v400, %v734
    %v736 = vpop.f32.mrb[0].mxu0
    %v737 = vpop.f32.mrb[0].mxu0
    %v738 = vadd.f32 %v400, %v737
    %v739 = vpop.f32.mrb[0].mxu0
    %740 = vdwg.mxu0
    %741 = vmatprep.subr.bf16.mxu0 0
    %742 = vmatpush1.bf16.msra.mxu0 %v614
    %743 = vmatprep.subr.bf16.mxu0 0
    %744 = vmatpush1.bf16.msra.mxu0 %v615
    %745 = vmatprep.subr.bf16.mxu0 0
    %746 = vmatpush1.bf16.msra.mxu0 %v616
    %747 = vmatprep.subr.bf16.mxu0 0
    %748 = vmatpush1.bf16.msra.mxu0 %v617
    %749 = vmatprep.subr.bf16.mxu0 0
    %750 = vmatpush1.bf16.msra.mxu0 %v618
    %751 = vmatprep.subr.bf16.mxu0 0
    %752 = vmatpush1.bf16.msra.mxu0 %v619
    %753 = vmatprep.subr.bf16.mxu0 0
    %754 = vmatpush1.bf16.msra.mxu0 %v620
    %755 = vmatprep.subr.bf16.mxu0 0
    %756 = vmatpush1.bf16.msra.mxu0 %v621
    %757 = vmatprep.subr.bf16.mxu0 0
    %758 = vmatpush1.bf16.msra.mxu0 %v622
    %759 = vmatprep.subr.bf16.mxu0 0
    %760 = vmatpush1.bf16.msra.mxu0 %v623
    %761 = vmatprep.subr.bf16.mxu0 0
    %762 = vmatpush1.bf16.msra.mxu0 %v624
    %763 = vmatprep.subr.bf16.mxu0 0
    %764 = vmatpush1.bf16.msra.mxu0 %v625
    %765 = vmatprep.subr.bf16.mxu0 0
    %766 = vmatpush1.bf16.msra.mxu0 %v626
    %767 = vmatprep.subr.bf16.mxu0 0
    %768 = vmatpush1.bf16.msra.mxu0 %v627
    %769 = vmatprep.subr.bf16.mxu0 0
    %770 = vmatpush1.bf16.msra.mxu0 %v628
    %771 = vmatprep.subr.bf16.mxu0 0
    %772 = vmatpush1.bf16.msra.mxu0 %v629
    %773 = vmatprep.mubr.bf16.mxu0 %v293
    %774 = vmatmul.mubr.bf16.gmra.mrb[0].mxu0 %v292
    %v775 = vpop.f32.mrb[0].mxu0
    %v776 = vadd.f32 %v735, %v775
    %v777 = vpop.f32.mrb[0].mxu0
    %v778 = vpop.f32.mrb[0].mxu0
    %v779 = vadd.f32 %v738, %v778
    %v780 = vpop.f32.mrb[0].mxu0
    %781 = vdwg.mxu0
    %782 = vmatprep.subr.bf16.mxu0 0
    %783 = vmatpush1.bf16.msra.mxu0 %v630
    %784 = vmatprep.subr.bf16.mxu0 0
    %785 = vmatpush1.bf16.msra.mxu0 %v631
    %786 = vmatprep.subr.bf16.mxu0 0
    %787 = vmatpush1.bf16.msra.mxu0 %v632
    %788 = vmatprep.subr.bf16.mxu0 0
    %789 = vmatpush1.bf16.msra.mxu0 %v633
    %790 = vmatprep.subr.bf16.mxu0 0
    %791 = vmatpush1.bf16.msra.mxu0 %v634
    %792 = vmatprep.subr.bf16.mxu0 0
    %793 = vmatpush1.bf16.msra.mxu0 %v635
    %794 = vmatprep.subr.bf16.mxu0 0
    %795 = vmatpush1.bf16.msra.mxu0 %v636
    %796 = vmatprep.subr.bf16.mxu0 0
    %797 = vmatpush1.bf16.msra.mxu0 %v637
    %798 = vmatprep.subr.bf16.mxu0 0
    %799 = vmatpush1.bf16.msra.mxu0 %v638
    %800 = vmatprep.subr.bf16.mxu0 0
    %801 = vmatpush1.bf16.msra.mxu0 %v639
    %802 = vmatprep.subr.bf16.mxu0 0
    %803 = vmatpush1.bf16.msra.mxu0 %v640
    %804 = vmatprep.subr.bf16.mxu0 0
    %805 = vmatpush1.bf16.msra.mxu0 %v641
    %806 = vmatprep.subr.bf16.mxu0 0
    %807 = vmatpush1.bf16.msra.mxu0 %v642
    %808 = vmatprep.subr.bf16.mxu0 0
    %809 = vmatpush1.bf16.msra.mxu0 %v643
    %810 = vmatprep.subr.bf16.mxu0 0
    %811 = vmatpush1.bf16.msra.mxu0 %v644
    %812 = vmatprep.subr.bf16.mxu0 0
    %813 = vmatpush1.bf16.msra.mxu0 %v645
    %814 = vmatprep.mubr.bf16.mxu0 %v295
    %815 = vmatmul.mubr.bf16.gmra.mrb[0].mxu0 %v294
    %v816 = vpop.f32.mrb[0].mxu0
    %v817 = vadd.f32 %v776, %v816
    %v818 = vpop.f32.mrb[0].mxu0
    %v819 = vpop.f32.mrb[0].mxu0
    %v820 = vadd.f32 %v779, %v819
    %v821 = vpop.f32.mrb[0].mxu0
    %822 = vdwg.mxu0
    %823 = vmatprep.subr.bf16.mxu0 0
    %824 = vmatpush1.bf16.msra.mxu0 %v646
    %825 = vmatprep.subr.bf16.mxu0 0
    %826 = vmatpush1.bf16.msra.mxu0 0
    %827 = vmatprep.subr.bf16.mxu0 0
    %828 = vmatpush1.bf16.msra.mxu0 0
    %829 = vmatprep.subr.bf16.mxu0 0
    %830 = vmatpush1.bf16.msra.mxu0 0
    %831 = vmatprep.subr.bf16.mxu0 0
    %832 = vmatpush1.bf16.msra.mxu0 0
    %833 = vmatprep.subr.bf16.mxu0 0
    %834 = vmatpush1.bf16.msra.mxu0 0
    %835 = vmatprep.subr.bf16.mxu0 0
    %836 = vmatpush1.bf16.msra.mxu0 0
    %837 = vmatprep.subr.bf16.mxu0 0
    %838 = vmatpush1.bf16.msra.mxu0 0
    %839 = vmatprep.subr.bf16.mxu0 0
    %840 = vmatpush1.bf16.msra.mxu0 0
    %841 = vmatprep.subr.bf16.mxu0 0
    %842 = vmatpush1.bf16.msra.mxu0 0
    %843 = vmatprep.subr.bf16.mxu0 0
    %844 = vmatpush1.bf16.msra.mxu0 0
    %845 = vmatprep.subr.bf16.mxu0 0
    %846 = vmatpush1.bf16.msra.mxu0 0
    %847 = vmatprep.subr.bf16.mxu0 0
    %848 = vmatpush1.bf16.msra.mxu0 0
    %849 = vmatprep.subr.bf16.mxu0 0
    %850 = vmatpush1.bf16.msra.mxu0 0
    %851 = vmatprep.subr.bf16.mxu0 0
    %852 = vmatpush1.bf16.msra.mxu0 0
    %853 = vmatprep.subr.bf16.mxu0 0
    %854 = vmatpush1.bf16.msra.mxu0 0
    %855 = vmatprep.mubr.bf16.mxu0 0
    %856 = vmatmul.mubr.bf16.gmra.mrb[0].mxu0 %v698
    %v857 = vpop.f32.mrb[0].mxu0
    %v858 = vadd.f32 %v817, %v857
    %v859 = vpop.f32.mrb[0].mxu0
    %v860 = vpop.f32.mrb[0].mxu0
    %v861 = vadd.f32 %v820, %v860
    %v862 = vpop.f32.mrb[0].mxu0
    %863 = vdwg.mxu0
    %v864 = vmax.f32 %v858, 0.0
    %v865 = vmax.f32 %v861, 0.0
    %v866 = vpack.c.bf16 %v865, %v864
    %v867 = vld [vmem:[#allocation7] sm:$0xf]
    %v868 = vld [vmem:[#allocation7 + $0x4] sm:$0xf]
    %v869 = vld [vmem:[#allocation7 + $0x8] sm:$0xf]
    %v870 = vld [vmem:[#allocation7 + $0xc] sm:$0xf]
    %v871 = vld [vmem:[#allocation7 + $0x10] sm:$0xf]
    %v872 = vld [vmem:[#allocation7 + $0x14] sm:$0xf]
    %v873 = vld [vmem:[#allocation7 + $0x18] sm:$0xf]
    %v874 = vld [vmem:[#allocation7 + $0x1c] sm:$0xf]
    %v875 = vld [vmem:[#allocation7 + $0x20] sm:$0xf]
    %v876 = vld [vmem:[#allocation7 + $0x24] sm:$0xf]
    %v877 = vld [vmem:[#allocation7 + $0x28] sm:$0xf]
    %v878 = vld [vmem:[#allocation7 + $0x2c] sm:$0xf]
    %v879 = vld [vmem:[#allocation7 + $0x30] sm:$0xf]
    %v880 = vld [vmem:[#allocation7 + $0x34] sm:$0xf]
    %v881 = vld [vmem:[#allocation7 + $0x38] sm:$0xf]
    %v882 = vld [vmem:[#allocation7 + $0x3c] sm:$0xf]
    %v883 = vld [vmem:[%s4] sm:$0x1]
    %v885 = vlaneseq
    %v886 = vshrl.u32 %v885, 7
    %v887 = vsub.s32 0, %v886
    %v888 = vrot.slane %v883, %v887
    %v906 = vunpack.c.l.b16 %v867
    %v907 = vunpack.c.l.b16 %v868
    %v908 = vunpack.c.l.b16 %v869
    %v909 = vunpack.c.l.b16 %v870
    %v910 = vunpack.c.l.b16 %v871
    %v911 = vunpack.c.l.b16 %v872
    %v912 = vunpack.c.l.b16 %v873
    %v913 = vunpack.c.l.b16 %v874
    %v914 = vunpack.c.l.b16 %v875
    %v915 = vunpack.c.l.b16 %v876
    %v916 = vunpack.c.l.b16 %v877
    %v917 = vunpack.c.l.b16 %v878
    %v918 = vunpack.c.l.b16 %v879
    %v919 = vunpack.c.l.b16 %v880
    %v920 = vunpack.c.l.b16 %v881
    %v921 = vunpack.c.l.b16 %v882
    %v922 = vpack.c.b16 %v907, %v906
    %v923 = vpack.c.b16 %v909, %v908
    %v924 = vpack.c.b16 %v911, %v910
    %v925 = vpack.c.b16 %v913, %v912
    %v926 = vpack.c.b16 %v915, %v914
    %v927 = vpack.c.b16 %v917, %v916
    %v928 = vpack.c.b16 %v919, %v918
    %v929 = vpack.c.b16 %v921, %v920
    %938 = vmatprep.subr.bf16.mxu0 0
    %939 = vmatpush1.bf16.msra.mxu0 %v922
    %940 = vmatprep.subr.bf16.mxu0 0
    %941 = vmatpush1.bf16.msra.mxu0 %v923
    %942 = vmatprep.subr.bf16.mxu0 0
    %943 = vmatpush1.bf16.msra.mxu0 %v924
    %944 = vmatprep.subr.bf16.mxu0 0
    %945 = vmatpush1.bf16.msra.mxu0 %v925
    %946 = vmatprep.subr.bf16.mxu0 0
    %947 = vmatpush1.bf16.msra.mxu0 %v926
    %948 = vmatprep.subr.bf16.mxu0 0
    %949 = vmatpush1.bf16.msra.mxu0 %v927
    %950 = vmatprep.subr.bf16.mxu0 0
    %951 = vmatpush1.bf16.msra.mxu0 %v928
    %952 = vmatprep.subr.bf16.mxu0 0
    %953 = vmatpush1.bf16.msra.mxu0 %v929
    %954 = vmatprep.subr.bf16.mxu0 0
    %955 = vmatpush1.bf16.msra.mxu0 0
    %956 = vmatprep.subr.bf16.mxu0 0
    %957 = vmatpush1.bf16.msra.mxu0 0
    %958 = vmatprep.subr.bf16.mxu0 0
    %959 = vmatpush1.bf16.msra.mxu0 0
    %960 = vmatprep.subr.bf16.mxu0 0
    %961 = vmatpush1.bf16.msra.mxu0 0
    %962 = vmatprep.subr.bf16.mxu0 0
    %963 = vmatpush1.bf16.msra.mxu0 0
    %964 = vmatprep.subr.bf16.mxu0 0
    %965 = vmatpush1.bf16.msra.mxu0 0
    %966 = vmatprep.subr.bf16.mxu0 0
    %967 = vmatpush1.bf16.msra.mxu0 0
    %968 = vmatprep.subr.bf16.mxu0 0
    %969 = vmatpush1.bf16.msra.mxu0 0
    %970 = vmatprep.mubr.bf16.mxu0 0
    %971 = vmatmul.mubr.bf16.gmra.mrb[0].mxu0 %v866
    %v972 = vpop.f32.mrb[0].mxu0
    %v973 = vadd.f32 %v888, %v972
    %v974 = vpop.f32.mrb[0].mxu0
    %v975 = vpop.f32.mrb[0].mxu0
    %v976 = vadd.f32 %v888, %v975
    %v977 = vpop.f32.mrb[0].mxu0
    %978 = vdwg.mxu0
    %v979 = vmax.f32 %v973, 0.0
    %v980 = vmax.f32 %v976, 0.0
    %v981 = vpack.c.bf16 %v980, %v979
    %v982 = vld [vmem:[#allocation8] sm:$0xf]
    %v983 = vld [vmem:[#allocation8 + $0x4] sm:$0xf]
    %v984 = vld [vmem:[#allocation8 + $0x8] sm:$0xf]
    %v985 = vld [vmem:[#allocation8 + $0xc] sm:$0xf]
    %v986 = vld [vmem:[#allocation8 + $0x10] sm:$0xf]
    %v987 = vld [vmem:[#allocation8 + $0x14] sm:$0xf]
    %v988 = vld [vmem:[#allocation8 + $0x18] sm:$0xf]
    %v989 = vld [vmem:[#allocation8 + $0x1c] sm:$0xf]
    %v990 = vld [vmem:[#allocation8 + $0x20] sm:$0xf]
    %v991 = vld [vmem:[#allocation8 + $0x24] sm:$0xf]
    %v992 = vld [vmem:[#allocation8 + $0x28] sm:$0xf]
    %v993 = vld [vmem:[#allocation8 + $0x2c] sm:$0xf]
    %v994 = vld [vmem:[#allocation8 + $0x30] sm:$0xf]
    %v995 = vld [vmem:[#allocation8 + $0x34] sm:$0xf]
    %v996 = vld [vmem:[#allocation8 + $0x38] sm:$0xf]
    %v997 = vld [vmem:[#allocation8 + $0x3c] sm:$0xf]
    %v998 = vld [vmem:[%s6] sm:$0x1]
    %v1000 = vlaneseq
    %v1001 = vshrl.u32 %v1000, 7
    %v1002 = vsub.s32 0, %v1001
    %v1003 = vrot.slane %v998, %v1002
    %v1021 = vunpack.c.l.b16 %v982
    %v1022 = vunpack.c.l.b16 %v983
    %v1023 = vunpack.c.l.b16 %v984
    %v1024 = vunpack.c.l.b16 %v985
    %v1025 = vunpack.c.l.b16 %v986
    %v1026 = vunpack.c.l.b16 %v987
    %v1027 = vunpack.c.l.b16 %v988
    %v1028 = vunpack.c.l.b16 %v989
    %v1029 = vunpack.c.l.b16 %v990
    %v1030 = vunpack.c.l.b16 %v991
    %v1031 = vunpack.c.l.b16 %v992
    %v1032 = vunpack.c.l.b16 %v993
    %v1033 = vunpack.c.l.b16 %v994
    %v1034 = vunpack.c.l.b16 %v995
    %v1035 = vunpack.c.l.b16 %v996
    %v1036 = vunpack.c.l.b16 %v997
    %v1037 = vpack.c.b16 %v1022, %v1021
    %v1038 = vpack.c.b16 %v1024, %v1023
    %v1039 = vpack.c.b16 %v1026, %v1025
    %v1040 = vpack.c.b16 %v1028, %v1027
    %v1041 = vpack.c.b16 %v1030, %v1029
    %v1042 = vpack.c.b16 %v1032, %v1031
    %v1043 = vpack.c.b16 %v1034, %v1033
    %v1044 = vpack.c.b16 %v1036, %v1035
    %1053 = vmatprep.subr.bf16.mxu0 0
    %1054 = vmatpush1.bf16.msra.mxu0 %v1037
    %1055 = vmatprep.subr.bf16.mxu0 0
    %1056 = vmatpush1.bf16.msra.mxu0 %v1038
    %1057 = vmatprep.subr.bf16.mxu0 0
    %1058 = vmatpush1.bf16.msra.mxu0 %v1039
    %1059 = vmatprep.subr.bf16.mxu0 0
    %1060 = vmatpush1.bf16.msra.mxu0 %v1040
    %1061 = vmatprep.subr.bf16.mxu0 0
    %1062 = vmatpush1.bf16.msra.mxu0 %v1041
    %1063 = vmatprep.subr.bf16.mxu0 0
    %1064 = vmatpush1.bf16.msra.mxu0 %v1042
    %1065 = vmatprep.subr.bf16.mxu0 0
    %1066 = vmatpush1.bf16.msra.mxu0 %v1043
    %1067 = vmatprep.subr.bf16.mxu0 0
    %1068 = vmatpush1.bf16.msra.mxu0 %v1044
    %1069 = vmatprep.subr.bf16.mxu0 0
    %1070 = vmatpush1.bf16.msra.mxu0 0
    %1071 = vmatprep.subr.bf16.mxu0 0
    %1072 = vmatpush1.bf16.msra.mxu0 0
    %1073 = vmatprep.subr.bf16.mxu0 0
    %1074 = vmatpush1.bf16.msra.mxu0 0
    %1075 = vmatprep.subr.bf16.mxu0 0
    %1076 = vmatpush1.bf16.msra.mxu0 0
    %1077 = vmatprep.subr.bf16.mxu0 0
    %1078 = vmatpush1.bf16.msra.mxu0 0
    %1079 = vmatprep.subr.bf16.mxu0 0
    %1080 = vmatpush1.bf16.msra.mxu0 0
    %1081 = vmatprep.subr.bf16.mxu0 0
    %1082 = vmatpush1.bf16.msra.mxu0 0
    %1083 = vmatprep.subr.bf16.mxu0 0
    %1084 = vmatpush1.bf16.msra.mxu0 0
    %1085 = vmatprep.mubr.bf16.mxu0 0
    %1086 = vmatmul.mubr.bf16.gmra.mrb[0].mxu0 %v981
    %v1087 = vpop.f32.mrb[0].mxu0
    %v1088 = vadd.f32 %v1003, %v1087
    %v1089 = vpop.f32.mrb[0].mxu0
    %v1090 = vpop.f32.mrb[0].mxu0
    %v1091 = vadd.f32 %v1003, %v1090
    %v1092 = vpop.f32.mrb[0].mxu0
    %1093 = vdwg.mxu0
    %v1094 = vmax.f32 %v1088, 0.0
    %v1095 = vmax.f32 %v1091, 0.0
    %v1096 = vpack.c.bf16 %v1095, %v1094
    %v1097 = vld [vmem:[#allocation10] sm:$0xf]
    %v1098 = vld [vmem:[#allocation10 + $0x4] sm:$0xf]
    %v1099 = vld [vmem:[#allocation10 + $0x8] sm:$0xf]
    %v1100 = vld [vmem:[#allocation10 + $0xc] sm:$0xf]
    %v1101 = vld [vmem:[#allocation10 + $0x10] sm:$0xf]
    %v1102 = vld [vmem:[#allocation10 + $0x14] sm:$0xf]
    %v1103 = vld [vmem:[#allocation10 + $0x18] sm:$0xf]
    %v1104 = vld [vmem:[#allocation10 + $0x1c] sm:$0xf]
    %v1105 = vld [vmem:[#allocation10 + $0x20] sm:$0xf]
    %v1106 = vld [vmem:[#allocation10 + $0x24] sm:$0xf]
    %v1107 = vld [vmem:[#allocation10 + $0x28] sm:$0xf]
    %v1108 = vld [vmem:[#allocation10 + $0x2c] sm:$0xf]
    %v1109 = vld [vmem:[#allocation10 + $0x30] sm:$0xf]
    %v1110 = vld [vmem:[#allocation10 + $0x34] sm:$0xf]
    %v1111 = vld [vmem:[#allocation10 + $0x38] sm:$0xf]
    %v1112 = vld [vmem:[#allocation10 + $0x3c] sm:$0xf]
    %v1113 = vld [vmem:[%s8] sm:$0x1]
    %v1115 = vlaneseq
    %v1116 = vshrl.u32 %v1115, 7
    %v1117 = vsub.s32 0, %v1116
    %v1118 = vrot.slane %v1113, %v1117
    %v1136 = vunpack.c.l.b16 %v1097
    %v1137 = vunpack.c.l.b16 %v1098
    %v1138 = vunpack.c.l.b16 %v1099
    %v1139 = vunpack.c.l.b16 %v1100
    %v1140 = vunpack.c.l.b16 %v1101
    %v1141 = vunpack.c.l.b16 %v1102
    %v1142 = vunpack.c.l.b16 %v1103
    %v1143 = vunpack.c.l.b16 %v1104
    %v1144 = vunpack.c.l.b16 %v1105
    %v1145 = vunpack.c.l.b16 %v1106
    %v1146 = vunpack.c.l.b16 %v1107
    %v1147 = vunpack.c.l.b16 %v1108
    %v1148 = vunpack.c.l.b16 %v1109
    %v1149 = vunpack.c.l.b16 %v1110
    %v1150 = vunpack.c.l.b16 %v1111
    %v1151 = vunpack.c.l.b16 %v1112
    %v1152 = vpack.c.b16 %v1137, %v1136
    %v1153 = vpack.c.b16 %v1139, %v1138
    %v1154 = vpack.c.b16 %v1141, %v1140
    %v1155 = vpack.c.b16 %v1143, %v1142
    %v1156 = vpack.c.b16 %v1145, %v1144
    %v1157 = vpack.c.b16 %v1147, %v1146
    %v1158 = vpack.c.b16 %v1149, %v1148
    %v1159 = vpack.c.b16 %v1151, %v1150
    %1168 = vmatprep.subr.bf16.mxu0 0
    %1169 = vmatpush1.bf16.msra.mxu0 %v1152
    %1170 = vmatprep.subr.bf16.mxu0 0
    %1171 = vmatpush1.bf16.msra.mxu0 %v1153
    %1172 = vmatprep.subr.bf16.mxu0 0
    %1173 = vmatpush1.bf16.msra.mxu0 %v1154
    %1174 = vmatprep.subr.bf16.mxu0 0
    %1175 = vmatpush1.bf16.msra.mxu0 %v1155
    %1176 = vmatprep.subr.bf16.mxu0 0
    %1177 = vmatpush1.bf16.msra.mxu0 %v1156
    %1178 = vmatprep.subr.bf16.mxu0 0
    %1179 = vmatpush1.bf16.msra.mxu0 %v1157
    %1180 = vmatprep.subr.bf16.mxu0 0
    %1181 = vmatpush1.bf16.msra.mxu0 %v1158
    %1182 = vmatprep.subr.bf16.mxu0 0
    %1183 = vmatpush1.bf16.msra.mxu0 %v1159
    %1184 = vmatprep.subr.bf16.mxu0 0
    %1185 = vmatpush1.bf16.msra.mxu0 0
    %1186 = vmatprep.subr.bf16.mxu0 0
    %1187 = vmatpush1.bf16.msra.mxu0 0
    %1188 = vmatprep.subr.bf16.mxu0 0
    %1189 = vmatpush1.bf16.msra.mxu0 0
    %1190 = vmatprep.subr.bf16.mxu0 0
    %1191 = vmatpush1.bf16.msra.mxu0 0
    %1192 = vmatprep.subr.bf16.mxu0 0
    %1193 = vmatpush1.bf16.msra.mxu0 0
    %1194 = vmatprep.subr.bf16.mxu0 0
    %1195 = vmatpush1.bf16.msra.mxu0 0
    %1196 = vmatprep.subr.bf16.mxu0 0
    %1197 = vmatpush1.bf16.msra.mxu0 0
    %1198 = vmatprep.subr.bf16.mxu0 0
    %1199 = vmatpush1.bf16.msra.mxu0 0
    %1200 = vmatprep.mubr.bf16.mxu0 0
    %1201 = vmatmul.mubr.bf16.gmra.mrb[0].mxu0 %v1096
    %v1202 = vpop.f32.mrb[0].mxu0
    %v1203 = vadd.f32 %v1118, %v1202
    %v1204 = vpop.f32.mrb[0].mxu0
    %v1205 = vpop.f32.mrb[0].mxu0
    %v1206 = vadd.f32 %v1118, %v1205
    %v1207 = vpop.f32.mrb[0].mxu0
    %1208 = vdwg.mxu0
    %v1209 = vpack.c.bf16 %v1206, %v1203
    %v1211 = vcombine.high %v1209, %v1209
    %v1213 = vunpack.c.l.s4 1966171168
    %v1214 = vunpack.c.0.s8 %v1213
    %v1215 = vlaneseq
    %v1216 = vshrl.u32 %v1215, 7
    %v1217 = vsub.s32 %v1214, %v1216
    %v1218 = vrot.slane %v1209, %v1217
    %v1220 = vunpack.c.l.s4 1966171168
    %v1221 = vunpack.c.0.s8 %v1220
    %v1222 = vlaneseq
    %v1223 = vshrl.u32 %v1222, 7
    %v1224 = vsub.s32 %v1221, %v1223
    %v1225 = vrot.slane %v1211, %v1224
    %v1226 = vcombine.high %v1218, %v1218
    %v1227 = vcombine.high %v1225, %v1225
    %v1229 = vunpack.c.l.s4 1966171168
    %v1230 = vunpack.c.0.s8 %v1229
    %v1231 = vlaneseq
    %v1232 = vshrl.u32 %v1231, 7
    %v1233 = vsub.s32 %v1230, %v1232
    %v1234 = vrot.slane %v1218, %v1233
    %v1236 = vunpack.c.l.s4 1966171168
    %v1237 = vunpack.c.0.s8 %v1236
    %v1238 = vlaneseq
    %v1239 = vshrl.u32 %v1238, 7
    %v1240 = vsub.s32 %v1237, %v1239
    %v1241 = vrot.slane %v1225, %v1240
    %v1243 = vunpack.c.l.s4 1966171168
    %v1244 = vunpack.c.0.s8 %v1243
    %v1245 = vlaneseq
    %v1246 = vshrl.u32 %v1245, 7
    %v1247 = vsub.s32 %v1244, %v1246
    %v1248 = vrot.slane %v1226, %v1247
    %v1250 = vunpack.c.l.s4 1966171168
    %v1251 = vunpack.c.0.s8 %v1250
    %v1252 = vlaneseq
    %v1253 = vshrl.u32 %v1252, 7
    %v1254 = vsub.s32 %v1251, %v1253
    %v1255 = vrot.slane %v1227, %v1254
    %v1256 = vcombine.high %v1234, %v1234
    %v1257 = vcombine.high %v1241, %v1241
    %v1258 = vcombine.high %v1248, %v1248
    %v1259 = vcombine.high %v1255, %v1255
    %1268 = vst [vmem:[#allocation11] sm:$0x1] %v1234
    %1269 = vst [vmem:[#allocation11 + $0x1] sm:$0x1] %v1248
    %1270 = vst [vmem:[#allocation11 + $0x2] sm:$0x1] %v1256
    %1271 = vst [vmem:[#allocation11 + $0x3] sm:$0x1] %v1258
    %1272 = vst [vmem:[#allocation11 + $0x4] sm:$0x1] %v1241
    %1273 = vst [vmem:[#allocation11 + $0x5] sm:$0x1] %v1255
    %1274 = vst [vmem:[#allocation11 + $0x6] sm:$0x1] %v1257
    %1275 = vst [vmem:[#allocation11 + $0x7] sm:$0x1] %v1259
    // Predicated region
    $region58: #{tpu_custom_call.1} parent=1 // pred_check
      _
    $region59: #{tpu_custom_call.1} parent=1 // pred_check_branch
      %1277 = sbr.rel (0) target = $region61
    $region60: #{tpu_custom_call.1} parent=1 // pred_region
      %s1279 = ssub.s32 128, 16
      %1280 = vsyncadd [#allocation4], %s1279
      %s1281 = sshll.u32 [#allocation11], 4
      %s1282 = int_to_ptr.vmem [resolvable:$true] %s1281
      %1287 = dma.vmem_to_hbm [thread:$0]  %s1282, 16, %s9, [#allocation4], 16, 16, 1
    $region61: #{tpu_custom_call.1} parent=1 // pred_fallthru
      _
    // Predicated region
    $region62: #{tpu_custom_call.1} parent=1 // pred_check
      _
    $region63: #{tpu_custom_call.1} parent=1 // pred_check_branch
      %1289 = sbr.rel (0) target = $region65
    $region64: #{tpu_custom_call.1} parent=1 // pred_region
      %1290 = dma.done [#allocation4], 128
    $region65: #{tpu_custom_call.1} parent=1 // pred_fallthru
      _
    %1291 = vsyncpa [#allocation3], 1
    %1292 = vsyncpa [#allocation6], 1
    %1293 = vsyncpa [#allocation9], 1
    %1294 = vsyncpa [#allocation4], 1

</llo_original>
